<compile_context>
chip_gen: v5e
topology: v5e:2x2
jax: 0.10.0
libtpu: 0.0.40
codegen_flags: <defaults>
</compile_context>

<pallas_src>
import functools

import jax
import jax.numpy as jnp
from jax.experimental import pallas as pl
from jax.experimental.pallas import tpu as pltpu


def _mlp3_kernel(x_ref, w_ref, b_ref, o_ref):
    # x_ref: (TB, n_mlp), w_ref: (n_mlp, 2) (pre-transposed), b_ref: (1, 2), o_ref: (TB, 2)
    z = jnp.dot(x_ref[...], w_ref[...],
                preferred_element_type=jnp.float32) + b_ref[...]
    # leaky_relu (PyTorch default negative_slope = 0.01)
    act = jnp.where(z >= 0.0, z, 0.01 * z)
    # softmax over the 2 logits == sigmoid(act1 - act0); stable form, no cross-lane
    # XLU reductions -- exp and reciprocal go to the otherwise-idle EUP slot.
    d = act[:, 1:2] - act[:, 0:1]                        # (TB, 1)
    e = jnp.exp(-jnp.abs(d))                             # EUP
    inv = pl.reciprocal(1.0 + e, approx=True)            # EUP (approx vrcp)
    p1 = jnp.where(d >= 0.0, inv, e * inv)               # (TB, 1), == softmax[..., 1]
    # Assemble both output columns with a single aligned full-tile store.
    lane = jax.lax.broadcasted_iota(jnp.int32, o_ref.shape, 1)   # 0 / 1 per column
    o_ref[...] = jnp.where(lane == 0, 1.0 - p1, p1).astype(o_ref.dtype)


@functools.partial(jax.jit, static_argnames=("tb_max",))
def mlp3_forward(x, weight, bias, *, tb_max=4096):
    """x: (B, n_mlp) f32, weight: (2, n_mlp) f32, bias: (2,) f32 -> (B, 2) f32."""
    B, n_mlp = x.shape
    w_t = weight.T                      # (n_mlp, 2)
    b2d = bias.reshape(1, 2)            # (1, 2) for broadcasting inside the kernel

    # Batch tile: full array if small, else a large multiple-of-8 tile.
    TB = B if B <= tb_max else tb_max
    grid = (pl.cdiv(B, TB),)

    cost = pl.CostEstimate(
        flops=2 * B * n_mlp * 2,
        transcendentals=2 * B,                                   # exp + reciprocal / row
        bytes_accessed=4 * (B * n_mlp + n_mlp * 2 + 2 + B * 2),
    )

    return pl.pallas_call(
        _mlp3_kernel,
        out_shape=jax.ShapeDtypeStruct((B, 2), jnp.float32),
        grid=grid,
        in_specs=[
            pl.BlockSpec((TB, n_mlp), lambda i: (i, 0)),   # batch-tiled activations
            pl.BlockSpec((n_mlp, 2), lambda i: (0, 0)),    # grid-invariant -> resident
            pl.BlockSpec((1, 2), lambda i: (0, 0)),        # grid-invariant -> resident
        ],
        out_specs=pl.BlockSpec((TB, 2), lambda i: (i, 0)),
        compiler_params=pltpu.CompilerParams(
            dimension_semantics=("parallel",),             # megacore-shardable on v7x
        ),
        cost_estimate=cost,
    )(x, w_t, b2d)


def _init_linear_params(key, in_features, out_features):
    """Deterministic init mimicking torch.nn.Linear defaults (kaiming uniform)."""
    kw, kb = jax.random.split(key)
    bound = float(jnp.sqrt(1.0 / in_features))
    weight = jax.random.uniform(kw, (out_features, in_features),
                                minval=-bound, maxval=bound, dtype=jnp.float32)
    bias = jax.random.uniform(kb, (out_features,),
                              minval=-bound, maxval=bound, dtype=jnp.float32)
    return weight, bias


def _reference(x, weight, bias):
    logits = x @ weight.T + bias
    act = jnp.where(logits >= 0.0, logits, 0.01 * logits)
    return jax.nn.softmax(act, axis=1)


if __name__ == "__main__":
    key = jax.random.PRNGKey(0)
    k_x, k_p = jax.random.split(key)

    B, n_mlp = 8, 32
    x = jax.random.normal(k_x, (B, n_mlp), dtype=jnp.float32)
    weight, bias = _init_linear_params(k_p, n_mlp, 2)

    out = jax.block_until_ready(mlp3_forward(x, weight, bias))
    assert out.shape == (B, 2)
    # approx reciprocal on the EUP -> slightly looser tolerance than exact divide.
    assert jnp.allclose(out, _reference(x, weight, bias), atol=2e-3, rtol=2e-3), \
        "mismatch vs reference (small batch)"

    # Exercise the tiled multi-block grid path at a still-small size (grid=(4,)).
    B2 = 256
    x2 = jax.random.normal(jax.random.PRNGKey(1), (B2, n_mlp), dtype=jnp.float32)
    out2 = jax.block_until_ready(mlp3_forward(x2, weight, bias, tb_max=64))
    assert out2.shape == (B2, 2)
    assert jnp.allclose(out2, _reference(x2, weight, bias), atol=2e-3, rtol=2e-3), \
        "mismatch vs reference (tiled batch)"

    print("KERNEL_OK")
</pallas_src>

<mosaic_0001>
module attributes {stable_mosaic.version = 11 : i64} {
  func.func @_mlp3_kernel(%arg0: i32, %arg1: memref<8x32xf32, #tpu.memory_space<vmem>>, %arg2: memref<32x2xf32, #tpu.memory_space<vmem>>, %arg3: memref<1x2xf32, #tpu.memory_space<vmem>>, %arg4: memref<8x2xf32, #tpu.memory_space<vmem>>) attributes {dimension_semantics = [#tpu.dimension_semantics<parallel>], iteration_bounds = array<i64: 1>, scalar_prefetch = 0 : i64, scratch_operands = 0 : i64, tpu.core_type = #tpu.core_type<tc>, window_params = [{transform_indices = @transform_0, window_bounds = array<i64: 8, 32>}, {pipeline_mode = #tpu.pipeline_mode<synchronous>, transform_indices = @transform_1, window_bounds = array<i64: 32, 2>}, {pipeline_mode = #tpu.pipeline_mode<synchronous>, transform_indices = @transform_2, window_bounds = array<i64: 1, 2>}, {transform_indices = @transform_3, window_bounds = array<i64: 8, 2>}]} {
    %c0 = arith.constant 0 : index
    %c0_0 = arith.constant 0 : index
    %0 = vector.load %arg1[%c0, %c0_0] : memref<8x32xf32, #tpu.memory_space<vmem>>, vector<8x32xf32>
    %c0_1 = arith.constant 0 : index
    %c0_2 = arith.constant 0 : index
    %1 = vector.load %arg2[%c0_1, %c0_2] : memref<32x2xf32, #tpu.memory_space<vmem>>, vector<32x2xf32>
    %cst = arith.constant dense<0.000000e+00> : vector<8x2xf32>
    %2 = tpu.matmul %0, %1, %cst {dimension_numbers = #tpu.dot_dimension_numbers<[1], [0], [0], [1], [0, 0, 1, 1], [], []>} : vector<8x32xf32>, vector<32x2xf32>, vector<8x2xf32> -> vector<8x2xf32>
    %c0_3 = arith.constant 0 : index
    %c0_4 = arith.constant 0 : index
    %3 = vector.load %arg3[%c0_3, %c0_4] : memref<1x2xf32, #tpu.memory_space<vmem>>, vector<1x2xf32>
    %4 = vector.broadcast %3 : vector<1x2xf32> to vector<8x2xf32>
    %5 = arith.addf %2, %4 : vector<8x2xf32>
    %cst_5 = arith.constant 0.000000e+00 : f32
    %6 = vector.broadcast %cst_5 : f32 to vector<8x2xf32>
    %7 = arith.cmpf oge, %5, %6 : vector<8x2xf32>
    %cst_6 = arith.constant 0.00999999977 : f32
    %8 = vector.broadcast %cst_6 : f32 to vector<8x2xf32>
    %9 = arith.mulf %8, %5 : vector<8x2xf32>
    %10 = arith.select %7, %5, %9 : vector<8x2xi1>, vector<8x2xf32>
    %11 = vector.extract_strided_slice %10 {offsets = [0, 1], sizes = [8, 1], strides = [1, 1]} : vector<8x2xf32> to vector<8x1xf32>
    %12 = vector.extract_strided_slice %10 {offsets = [0, 0], sizes = [8, 1], strides = [1, 1]} : vector<8x2xf32> to vector<8x1xf32>
    %13 = arith.subf %11, %12 : vector<8x1xf32>
    %14 = math.absf %13 : vector<8x1xf32>
    %cst_7 = arith.constant 0.000000e+00 : f32
    %15 = vector.broadcast %cst_7 : f32 to vector<8x1xf32>
    %16 = arith.subf %15, %14 : vector<8x1xf32>
    %17 = math.exp %16 : vector<8x1xf32>
    %cst_8 = arith.constant 1.000000e+00 : f32
    %18 = vector.broadcast %cst_8 : f32 to vector<8x1xf32>
    %19 = arith.addf %18, %17 : vector<8x1xf32>
    %20 = tpu.reciprocal %19 {approx = true} : vector<8x1xf32> -> vector<8x1xf32>
    %cst_9 = arith.constant 0.000000e+00 : f32
    %21 = vector.broadcast %cst_9 : f32 to vector<8x1xf32>
    %22 = arith.cmpf oge, %13, %21 : vector<8x1xf32>
    %23 = arith.mulf %17, %20 : vector<8x1xf32>
    %24 = arith.select %22, %20, %23 : vector<8x1xi1>, vector<8x1xf32>
    %25 = tpu.iota {dimensions = array<i32: 1>} : vector<8x2xi32>
    %c0_i32 = arith.constant 0 : i32
    %26 = vector.broadcast %c0_i32 : i32 to vector<8x2xi32>
    %27 = arith.cmpi eq, %25, %26 : vector<8x2xi32>
    %cst_10 = arith.constant 1.000000e+00 : f32
    %28 = vector.broadcast %cst_10 : f32 to vector<8x1xf32>
    %29 = arith.subf %28, %24 : vector<8x1xf32>
    %30 = vector.shape_cast %29 : vector<8x1xf32> to vector<8x1xf32>
    %31 = vector.broadcast %30 : vector<8x1xf32> to vector<8x2xf32>
    %32 = vector.shape_cast %24 : vector<8x1xf32> to vector<8x1xf32>
    %33 = vector.broadcast %32 : vector<8x1xf32> to vector<8x2xf32>
    %34 = arith.select %27, %31, %33 : vector<8x2xi1>, vector<8x2xf32>
    %c0_11 = arith.constant 0 : index
    %c0_12 = arith.constant 0 : index
    %35 = vector.load %arg4[%c0_11, %c0_12] : memref<8x2xf32, #tpu.memory_space<vmem>>, vector<8x2xf32>
    tpu.vector_store %arg4[%c0_11, %c0_12], %34 {strides = array<i32>} : memref<8x2xf32, #tpu.memory_space<vmem>>, vector<8x2xf32>,
    return
  }
  func.func @transform_0(%arg0: i32) -> (i32, i32) {
    %c0_i32 = arith.constant 0 : i32
    %c0_i32_0 = arith.constant 0 : i32
    return %arg0, %c0_i32 : i32, i32
  }
  func.func @transform_1(%arg0: i32) -> (i32, i32) {
    %c0_i32 = arith.constant 0 : i32
    %c0_i32_0 = arith.constant 0 : i32
    %c0_i32_1 = arith.constant 0 : i32
    return %c0_i32, %c0_i32_0 : i32, i32
  }
  func.func @transform_2(%arg0: i32) -> (i32, i32) {
    %c0_i32 = arith.constant 0 : i32
    %c0_i32_0 = arith.constant 0 : i32
    %c0_i32_1 = arith.constant 0 : i32
    return %c0_i32, %c0_i32_0 : i32, i32
  }
  func.func @transform_3(%arg0: i32) -> (i32, i32) {
    %c0_i32 = arith.constant 0 : i32
    %c0_i32_0 = arith.constant 0 : i32
    return %arg0, %c0_i32 : i32, i32
  }
}

</mosaic_0001>

<llo_original>
// kernel: mlp3_forward.1
$region0: #{mlp3_forward.1}
  #allocation0 [shape = 'u32[]', space=smem, size = 0x4, offset = 0x4, fixed_abs, tag = 'smem constant byte address 0x4 - core index']
  #allocation1 [shape = 'u32[72,128]{1,0:T(1,128)}', space=vmem, size = 0x9000, scoped, tag = 'internal scratch']
  %s0 = inlined_call_operand.vmem [shape: f32[8,32], index: 0, kind: input, shape index: {}]
  %s1 = inlined_call_operand.vmem [shape: f32[32,2], index: 1, kind: input, shape index: {}]
  %s2 = inlined_call_operand.vmem [shape: f32[1,2], index: 2, kind: input, shape index: {}]
  %s3 = inlined_call_operand.vmem [shape: f32[8,2], index: 3, kind: output, shape index: {}]
  %s4 = sld [smem:[#allocation0]]
  $region22: #{mlp3_forward.1} parent=0
    _
  %s6 = ssub.s32 1, %s4
  %s7 = scalar_select 0, %s6, %s4
  // Predicated region
  $region2: #{mlp3_forward.1} parent=0 // pred_check
    _
  $region3: #{mlp3_forward.1} parent=0 // pred_check_branch
    %9 = sbr.rel (0) target = $region5
  $region4: #{mlp3_forward.1} parent=0 // pred_region
    _
  $region5: #{mlp3_forward.1} parent=0 // pred_fallthru
    _
  // Predicated region
  $region6: #{mlp3_forward.1} parent=0 // pred_check
    _
  $region7: #{mlp3_forward.1} parent=0 // pred_check_branch
    %11 = sbr.rel (0) target = $region9
  $region8: #{mlp3_forward.1} parent=0 // pred_region
    _
  $region9: #{mlp3_forward.1} parent=0 // pred_fallthru
    _
  // Predicated region
  $region10: #{mlp3_forward.1} parent=0 // pred_check
    _
  $region11: #{mlp3_forward.1} parent=0 // pred_check_branch
    %13 = sbr.rel (0) target = $region13
  $region12: #{mlp3_forward.1} parent=0 // pred_region
    _
  $region13: #{mlp3_forward.1} parent=0 // pred_fallthru
    _
  %v14 = vld [vmem:[%s0] sm:$0xff]
  %v15 = vld [vmem:[%s1] sm:$0xff]
  %v16 = vld [vmem:[%s1 + $0x8] sm:$0xff]
  %v17 = vld [vmem:[%s1 + $0x10] sm:$0xff]
  %v18 = vld [vmem:[%s1 + $0x18] sm:$0xff]
  %v19 = vld [vmem:[%s2] sm:$0x1]
  %v21 = vperm.slane %v19, 0
  %vm23 = vcmask 261120
  %v25 = vsel %vm23, %v14, 0
  %27 = vmatpush.msra.mxu0 0.0
  %28 = vmatpush.msra.mxu0 0.0
  %29 = vmatpush.msra.mxu0 0.0
  %30 = vmatpush.msra.mxu0 0.0
  %31 = vmatpush.msra.mxu0 0.0
  %32 = vmatpush.msra.mxu0 0.0
  %33 = vmatpush.msra.mxu0 0.0
  %34 = vmatpush.msra.mxu0 0.0
  %35 = vmatpush.msra.mxu0 0.0
  %36 = vmatpush.msra.mxu0 0.0
  %37 = vmatpush.msra.mxu0 0.0
  %38 = vmatpush.msra.mxu0 0.0
  %39 = vmatpush.msra.mxu0 %v18
  %40 = vmatpush.msra.mxu0 %v17
  %41 = vmatpush.msra.mxu0 %v16
  %42 = vmatpush.msra.mxu0 %v15
  %43 = vmatmul.f32.gmra.mxu0 %v25
  %v44 = vpop.f32.mrf.mxu0
  %v45 = vadd.f32 %v21, %v44
  %46 = vdwg.mxu0
  %vm47 = vcmp.ge.f32.partialorder %v45, 0.0
  %v48 = vmul.f32 %v45, 0.01
  %v49 = vsel %vm47, %v45, %v48
  %51 = vrot.lane.b32.xlu0 %v49, 1
  %v52 = vpop.permute.xlu0 %51
  %v54 = vsub.f32 %v49, %v52
  %v55 = vand.u32 2147483647, %v54
  %v56 = vsub.f32 0.0, %v55
  %v57 = vmul.f32 %v56, 1.442695
  %v58 = vpow.pop %v57
  %v59 = vadd.f32 %v58, 1.0
  %v60 = vrcp.pop %v59
  %vm61 = vcmp.ge.f32.partialorder %v54, 0.0
  %v62 = vmul.f32 %v58, %v60
  %v63 = vsel %vm61, %v60, %v62
  %v64 = vlaneseq
  %v65 = vand.u32 %v64, 127
  %vm66 = vcmp.eq.s32.totalorder %v65, 0
  %v67 = vsub.f32 1.0, %v63
  %69 = vset.pattern.permute.xlu0 1
  %70 = vperm.xlu0 %69, %v67
  %v71 = vpop.permute.xlu0 %70
  %74 = vset.pattern.permute.xlu0 1
  %75 = vperm.xlu0 %74, %v63
  %v76 = vpop.permute.xlu0 %75
  %v78 = vsel %vm66, %v71, %v76
  %vm79 = vcmask 15360
  %80 = vst.msk [vmem:[%s3] sm:$0xff] %vm79, %v78
  // Predicated region
  $region14: #{mlp3_forward.1} parent=0 // pred_check
    _
  $region15: #{mlp3_forward.1} parent=0 // pred_check_branch
    %82 = sbr.rel (0) target = $region17
  $region16: #{mlp3_forward.1} parent=0 // pred_region
    _
  $region17: #{mlp3_forward.1} parent=0 // pred_fallthru
    _
  // Predicated region
  $region18: #{mlp3_forward.1} parent=0 // pred_check
    _
  $region19: #{mlp3_forward.1} parent=0 // pred_check_branch
    %84 = sbr.rel (0) target = $region21
  $region20: #{mlp3_forward.1} parent=0 // pred_region
    _
  $region21: #{mlp3_forward.1} parent=0 // pred_fallthru
    _

</llo_original>
